<compile_context>
chip_gen: v6e
topology: v6e:2x2x1
jax: 0.10.0
libtpu: 0.0.40
codegen_flags: <defaults>
</compile_context>

<pallas_src>
import functools

import jax
import jax.numpy as jnp
from jax import lax
from jax.experimental import pallas as pl
from jax.experimental.pallas import tpu as pltpu


def _prelookahead_kernel(x_ref, halo_ref, w1_ref, b1_ref, w2_ref, b2_ref,
                         o_ref, *, L, nt, neg_slope):
    # x_ref    : (1, tT, C)      body tile (auto-pipelined), also the residual
    # halo_ref : (1, 2+L, C)     [0:2] = left halo rows, [2:2+L] = right halo
    # w1_ref   : ((L+1)*C, C)    conv1 taps stacked along the K axis
    # b1_ref   : (1, C) f32      w2_ref: (3*C, C)      b2_ref: (1, C) f32
    # o_ref    : (1, tT, C)
    i = pl.program_id(0)
    t = i % nt                       # time-tile index within the sequence
    tT = o_ref.shape[1]
    C = o_ref.shape[2]
    E = tT + 2                       # y1 rows needed: global [t0-2, t0+tT)

    x_body = x_ref[0]                                   # (tT, C)
    halo = halo_ref[0]                                  # (2+L, C)
    hl = halo[0:2, :]                                   # rows [t0-2, t0)
    hr = halo[2:2 + L, :]                               # rows [t0+tT, t0+tT+L)

    # Extended window; local row m <-> global time t0 - 2 + m.
    xext = jnp.concatenate([hl, x_body, hr], axis=0)    # (tT+2+L, C)

    # ---- conv1 (lookahead, kernel L+1) as ONE matmul via lane-axis im2col:
    #   A1[:, k*C:(k+1)*C] = xext[k:k+E]  ;  y1 = A1 @ W1_stacked + b1
    a1 = jnp.concatenate([xext[k:k + E, :] for k in range(L + 1)], axis=1)
    y1 = jnp.dot(a1, w1_ref[...], preferred_element_type=jnp.float32)
    y1 = y1 + b1_ref[...]
    y1 = jnp.where(y1 >= 0, y1, neg_slope * y1)         # leaky_relu (f32)

    # Causal left pad: the module zero-pads *y1* by 2 frames; zero the rows
    # whose global y1 index is negative (only ever hits the first time tile —
    # a single (E,1)-broadcast select, negligible next to the matmuls).
    row = lax.broadcasted_iota(jnp.int32, (E, 1), 0)
    y1 = jnp.where(t * tT - 2 + row >= 0, y1, 0.0)
    y1c = y1.astype(x_body.dtype)                       # back to MXU dtype

    # ---- conv2 (causal, kernel 3) as ONE matmul via im2col:
    #   A2[:, k*C:(k+1)*C] = y1[k:k+tT]  ;  y2 = A2 @ W2_stacked + b2
    a2 = jnp.concatenate([y1c[k:k + tT, :] for k in range(3)], axis=1)
    y2 = jnp.dot(a2, w2_ref[...], preferred_element_type=jnp.float32)
    y2 = y2 + b2_ref[...]

    # residual add in f32, single lane-dense store of the output block
    o_ref[...] = (y2 + x_body.astype(jnp.float32)).astype(o_ref.dtype)[None]


def prepare_params(w1, b1, w2, b2, compute_dtype=jnp.bfloat16):
    """One-time (module-init) re-layout of the PyTorch Conv1d parameters.

    w*: (Cout, Cin, K) -> stacked (K*Cin, Cout) so each conv is a single
    im2col matmul inside the kernel.  Weights are cast to the MXU compute
    dtype (bf16 by default); biases stay f32.
    """
    Cout, Cin, K1 = w1.shape
    _, _, K2 = w2.shape
    w1_s = jnp.transpose(w1, (2, 1, 0)).reshape(K1 * Cin, Cout).astype(compute_dtype)
    w2_s = jnp.transpose(w2, (2, 1, 0)).reshape(K2 * Cin, Cout).astype(compute_dtype)
    b1_r = b1.reshape(1, -1).astype(jnp.float32)
    b2_r = b2.reshape(1, -1).astype(jnp.float32)
    return w1_s, b1_r, w2_s, b2_r


def _pick_t_tile(T, t_tile_max, dtype, L):
    """Largest time tile <= t_tile_max that divides T and respects the sublane
    quantum (8 f32 / 16 bf16) and tile >= max(2, L).  If no divisor exists,
    return a capped tile; the wrapper then zero-pads T up to a multiple (this
    guards v7x's 64 MiB VMEM instead of falling back to tile == T)."""
    sub = 16 if jnp.dtype(dtype).itemsize <= 2 else 8
    lo = max(2, L)
    best = None
    for cand in range(sub, min(t_tile_max, T) + 1, sub):
        if T % cand == 0 and cand >= lo:
            best = cand
    if best is None:
        best = max(sub, min((t_tile_max // sub) * sub, ((T + sub - 1) // sub) * sub))
        best = max(best, ((lo + sub - 1) // sub) * sub)
    return best


def _build_halos(x_tiles, L):
    """x_tiles: (B, nt, tT, C).  Returns (B, nt, 2+L, C): for each tile, the 2
    rows preceding it (zeros for the first tile -> conv2's causal pad comes
    from y1 masking instead) and the L rows following it (zeros for the last
    tile == conv1's lookahead right pad).  Only ~(2+L)/tT of x is re-read."""
    B, nt, tT, C = x_tiles.shape
    zl = jnp.zeros((B, 1, 2, C), x_tiles.dtype)
    left = jnp.concatenate([zl, x_tiles[:, :-1, tT - 2:, :]], axis=1)
    zr = jnp.zeros((B, 1, L, C), x_tiles.dtype)
    right = jnp.concatenate([x_tiles[:, 1:, :L, :], zr], axis=1)
    return jnp.concatenate([left, right], axis=2)


def pre_lookahead_layer(x, params, pre_lookahead_len, *, t_tile=1024,
                        out_dtype=None):
    """x: (B, T, C). params: output of prepare_params().  Matches
    PreLookaheadLayer.forward (lookahead conv1 + leaky_relu, causal conv2,
    residual add)."""
    w1_s, b1_r, w2_s, b2_r = params
    B, T, C = x.shape
    L = pre_lookahead_len
    cdtype = w1_s.dtype
    assert w1_s.shape == ((L + 1) * C, C), (w1_s.shape, L, C)
    assert w2_s.shape == (3 * C, C), (w2_s.shape, C)
    if out_dtype is None:
        out_dtype = x.dtype            # PyTorch-faithful: residual/out dtype = input dtype
    if x.dtype != cdtype:
        # In a real model the producing layer should already emit this dtype.
        x = x.astype(cdtype)

    tT = _pick_t_tile(T, t_tile, cdtype, L)
    assert tT >= max(2, L), (T, tT, L)
    nt = pl.cdiv(T, tT)
    T_pad = nt * tT
    if T_pad != T:
        # Zero right-pad to a tile multiple: semantically free (conv1 already
        # right-pads with zeros), padded output rows are sliced off below.
        # TODO(synk): true ragged last tile (masked block) to skip this copy.
        x = jnp.pad(x, ((0, 0), (0, T_pad - T), (0, 0)))

    x_tiles = x.reshape(B, nt, tT, C)                  # free view (splits T)
    halos = _build_halos(x_tiles, L).reshape(B * nt, 2 + L, C)
    x_flat = x_tiles.reshape(B * nt, tT, C)
    G = B * nt                                         # flattened grid: works
    #                                                    for B == 1 on megacore

    kernel = functools.partial(_prelookahead_kernel, L=L, nt=nt, neg_slope=0.01)

    out = pl.pallas_call(
        kernel,
        out_shape=jax.ShapeDtypeStruct((G, tT, C), out_dtype),
        grid_spec=pltpu.PrefetchScalarGridSpec(
            num_scalar_prefetch=0,
            grid=(G,),
            in_specs=[
                # Body tile: auto-pipelined HBM->VMEM stream; also the residual,
                # so the bulk of x is streamed from HBM exactly once.
                pl.BlockSpec((1, tT, C), lambda i: (i, 0, 0)),
                # Per-tile halos: tiny side input, prefetched one grid step
                # ahead by the same pipeline (no manual DMA on the critical path).
                pl.BlockSpec((1, 2 + L, C), lambda i: (i, 0, 0)),
                # Weights/biases: constant block index => fetched once.
                # TODO(synk): pipeline_mode=pl.Buffered(1) would drop the unused
                # second pipeline buffer for these invariant operands.
                pl.BlockSpec(((L + 1) * C, C), lambda i: (0, 0)),
                pl.BlockSpec((1, C), lambda i: (0, 0)),
                pl.BlockSpec((3 * C, C), lambda i: (0, 0)),
                pl.BlockSpec((1, C), lambda i: (0, 0)),
            ],
            out_specs=pl.BlockSpec((1, tT, C), lambda i: (i, 0, 0)),
        ),
        compiler_params=pltpu.CompilerParams(
            # Tiles are independent (halo recompute), so the whole flattened
            # grid is parallel -> v7x's two TensorCores split it.
            dimension_semantics=("parallel",),
            # Headroom under v7x's 64 MiB physical VMEM; fine on v5e/v6e too.
            vmem_limit_bytes=48 * 1024 * 1024,
        ),
    )(x_flat, halos, w1_s, b1_r, w2_s, b2_r)

    out = out.reshape(B, T_pad, C)
    if T_pad != T:
        out = out[:, :T, :]
    return out


def ref_forward(x, w1, b1, w2, b2, L):
    """Pure-JAX f32 reference mirroring the PyTorch forward (NCW convs)."""
    xt = jnp.transpose(x, (0, 2, 1))                          # (B, C, T)
    xt = jnp.pad(xt, ((0, 0), (0, 0), (0, L)))
    y = lax.conv_general_dilated(xt, w1, (1,), 'VALID',
                                 dimension_numbers=('NCH', 'OIH', 'NCH'))
    y = y + b1[None, :, None]
    y = jnp.where(y >= 0, y, 0.01 * y)
    y = jnp.pad(y, ((0, 0), (0, 0), (2, 0)))
    y = lax.conv_general_dilated(y, w2, (1,), 'VALID',
                                 dimension_numbers=('NCH', 'OIH', 'NCH'))
    y = y + b2[None, :, None]
    return jnp.transpose(y, (0, 2, 1)) + x


if __name__ == "__main__":
    B, T, C = 2, 32, 128
    L = 3                      # pre_lookahead_len

    key = jax.random.PRNGKey(0)
    kx, k1, k2, k3, k4 = jax.random.split(key, 5)
    x = jax.random.normal(kx, (B, T, C), dtype=jnp.float32)
    # Conv1d param shapes (PyTorch): weight (Cout, Cin, K), bias (Cout,)
    w1 = jax.random.normal(k1, (C, C, L + 1), dtype=jnp.float32) * 0.1
    b1 = jax.random.normal(k2, (C,), dtype=jnp.float32) * 0.1
    w2 = jax.random.normal(k3, (C, C, 3), dtype=jnp.float32) * 0.1
    b2 = jax.random.normal(k4, (C,), dtype=jnp.float32) * 0.1

    expected = ref_forward(x, w1, b1, w2, b2, L)

    # f32 path: t_tile=16 -> 2 time tiles per sequence, so the halo / edge
    # padding logic is exercised.  Tolerance covers accumulation-order
    # differences between the fused im2col matmul and XLA's conv.
    params_f32 = prepare_params(w1, b1, w2, b2, jnp.float32)
    out = jax.block_until_ready(pre_lookahead_layer(x, params_f32, L, t_tile=16))
    assert out.shape == (B, T, C) and out.dtype == jnp.float32
    err = jnp.max(jnp.abs(out - expected))
    assert jnp.allclose(out, expected, atol=5e-4, rtol=5e-4), (
        f"f32 max abs err {err}")

    # Non-divisible T: exercises the guarded fallback (zero-pad to a tile
    # multiple, slice back) instead of a whole-sequence tile.
    T_odd = 27
    x_odd = x[:, :T_odd, :]
    expected_odd = ref_forward(x_odd, w1, b1, w2, b2, L)
    out_odd = jax.block_until_ready(
        pre_lookahead_layer(x_odd, params_f32, L, t_tile=16))
    assert out_odd.shape == (B, T_odd, C)
    err_odd = jnp.max(jnp.abs(out_odd - expected_odd))
    assert jnp.allclose(out_odd, expected_odd, atol=5e-4, rtol=5e-4), (
        f"odd-T max abs err {err_odd}")

    # bf16 path (default compute dtype: MXU-native weights/activations, f32
    # accumulation/bias/relu/residual): loose check against the f32 reference.
    params_bf16 = prepare_params(w1, b1, w2, b2)
    out_bf16 = jax.block_until_ready(
        pre_lookahead_layer(x, params_bf16, L, t_tile=16))
    assert out_bf16.dtype == jnp.float32   # output dtype follows the input
    err_bf16 = jnp.max(jnp.abs(out_bf16 - expected))
    assert err_bf16 < 1.0, f"bf16 max abs err {err_bf16}"

    print("KERNEL_OK")
</pallas_src>

<mosaic_0001>
module attributes {stable_mosaic.version = 11 : i64} {
  func.func @_prelookahead_kernel(%arg0: i32, %arg1: memref<1x16x128xf32, #tpu.memory_space<vmem>>, %arg2: memref<1x5x128xf32, #tpu.memory_space<vmem>>, %arg3: memref<512x128xf32, #tpu.memory_space<vmem>>, %arg4: memref<1x128xf32, #tpu.memory_space<vmem>>, %arg5: memref<384x128xf32, #tpu.memory_space<vmem>>, %arg6: memref<1x128xf32, #tpu.memory_space<vmem>>, %arg7: memref<1x16x128xf32, #tpu.memory_space<vmem>>) attributes {dimension_semantics = [#tpu.dimension_semantics<parallel>], iteration_bounds = array<i64: 4>, scalar_prefetch = 0 : i64, scratch_operands = 0 : i64, tpu.core_type = #tpu.core_type<tc>, window_params = [{transform_indices = @transform_0, window_bounds = array<i64: 1, 16, 128>}, {transform_indices = @transform_1, window_bounds = array<i64: 1, 5, 128>}, {pipeline_mode = #tpu.pipeline_mode<synchronous>, transform_indices = @transform_2, window_bounds = array<i64: 512, 128>}, {pipeline_mode = #tpu.pipeline_mode<synchronous>, transform_indices = @transform_3, window_bounds = array<i64: 1, 128>}, {pipeline_mode = #tpu.pipeline_mode<synchronous>, transform_indices = @transform_4, window_bounds = array<i64: 384, 128>}, {pipeline_mode = #tpu.pipeline_mode<synchronous>, transform_indices = @transform_5, window_bounds = array<i64: 1, 128>}, {transform_indices = @transform_6, window_bounds = array<i64: 1, 16, 128>}]} {
    %c2_i32 = arith.constant 2 : i32
    %c0_i32 = arith.constant 0 : i32
    %0 = arith.cmpi eq, %c2_i32, %c0_i32 : i32
    %c1_i32 = arith.constant 1 : i32
    %1 = arith.select %0, %c1_i32, %c2_i32 : i32
    %2 = arith.remsi %arg0, %1 : i32
    %c0_i32_0 = arith.constant 0 : i32
    %3 = arith.cmpi ne, %2, %c0_i32_0 : i32
    %c0_i32_1 = arith.constant 0 : i32
    %4 = arith.cmpi slt, %2, %c0_i32_1 : i32
    %c0_i32_2 = arith.constant 0 : i32
    %5 = arith.cmpi slt, %1, %c0_i32_2 : i32
    %6 = arith.xori %4, %5 : i1
    %7 = arith.andi %6, %3 : i1
    %8 = arith.addi %2, %1 : i32
    %9 = arith.select %7, %8, %2 : i32
    %c0 = arith.constant 0 : index
    %c0_3 = arith.constant 0 : index
    %c0_4 = arith.constant 0 : index
    %10 = vector.load %arg1[%c0, %c0_3, %c0_4] : memref<1x16x128xf32, #tpu.memory_space<vmem>>, vector<1x16x128xf32>
    %11 = vector.shape_cast %10 : vector<1x16x128xf32> to vector<16x128xf32>
    %c0_5 = arith.constant 0 : index
    %c0_6 = arith.constant 0 : index
    %c0_7 = arith.constant 0 : index
    %12 = vector.load %arg2[%c0_5, %c0_6, %c0_7] : memref<1x5x128xf32, #tpu.memory_space<vmem>>, vector<1x5x128xf32>
    %13 = vector.shape_cast %12 : vector<1x5x128xf32> to vector<5x128xf32>
    %14 = vector.extract_strided_slice %13 {offsets = [0, 0], sizes = [2, 128], strides = [1, 1]} : vector<5x128xf32> to vector<2x128xf32>
    %15 = vector.extract_strided_slice %13 {offsets = [2, 0], sizes = [3, 128], strides = [1, 1]} : vector<5x128xf32> to vector<3x128xf32>
    %16 = tpu.concatenate %14, %11, %15 in 0 : vector<2x128xf32>, vector<16x128xf32>, vector<3x128xf32> -> vector<21x128xf32>
    %17 = vector.extract_strided_slice %16 {offsets = [0, 0], sizes = [18, 128], strides = [1, 1]} : vector<21x128xf32> to vector<18x128xf32>
    %18 = vector.extract_strided_slice %16 {offsets = [1, 0], sizes = [18, 128], strides = [1, 1]} : vector<21x128xf32> to vector<18x128xf32>
    %19 = vector.extract_strided_slice %16 {offsets = [2, 0], sizes = [18, 128], strides = [1, 1]} : vector<21x128xf32> to vector<18x128xf32>
    %20 = vector.extract_strided_slice %16 {offsets = [3, 0], sizes = [18, 128], strides = [1, 1]} : vector<21x128xf32> to vector<18x128xf32>
    %21 = tpu.concatenate %17, %18, %19, %20 in 1 : vector<18x128xf32>, vector<18x128xf32>, vector<18x128xf32>, vector<18x128xf32> -> vector<18x512xf32>
    %c0_8 = arith.constant 0 : index
    %c0_9 = arith.constant 0 : index
    %22 = vector.load %arg3[%c0_8, %c0_9] : memref<512x128xf32, #tpu.memory_space<vmem>>, vector<512x128xf32>
    %cst = arith.constant dense<0.000000e+00> : vector<18x128xf32>
    %23 = tpu.matmul %21, %22, %cst {dimension_numbers = #tpu.dot_dimension_numbers<[1], [0], [0], [1], [0, 0, 1, 1], [], []>} : vector<18x512xf32>, vector<512x128xf32>, vector<18x128xf32> -> vector<18x128xf32>
    %c0_10 = arith.constant 0 : index
    %c0_11 = arith.constant 0 : index
    %24 = vector.load %arg4[%c0_10, %c0_11] : memref<1x128xf32, #tpu.memory_space<vmem>>, vector<1x128xf32>
    %25 = vector.broadcast %24 : vector<1x128xf32> to vector<18x128xf32>
    %26 = arith.addf %23, %25 : vector<18x128xf32>
    %cst_12 = arith.constant 0.000000e+00 : f32
    %27 = vector.broadcast %cst_12 : f32 to vector<18x128xf32>
    %28 = arith.cmpf oge, %26, %27 : vector<18x128xf32>
    %cst_13 = arith.constant 0.00999999977 : f32
    %29 = vector.broadcast %cst_13 : f32 to vector<18x128xf32>
    %30 = arith.mulf %29, %26 : vector<18x128xf32>
    %31 = arith.select %28, %26, %30 : vector<18x128xi1>, vector<18x128xf32>
    %32 = tpu.iota {dimensions = array<i32: 0>} : vector<18x1xi32>
    %c16_i32 = arith.constant 16 : i32
    %33 = arith.muli %9, %c16_i32 : i32
    %c2_i32_14 = arith.constant 2 : i32
    %34 = arith.subi %33, %c2_i32_14 : i32
    %35 = vector.broadcast %34 : i32 to vector<18x1xi32>
    %36 = arith.addi %35, %32 : vector<18x1xi32>
    %c0_i32_15 = arith.constant 0 : i32
    %37 = vector.broadcast %c0_i32_15 : i32 to vector<18x1xi32>
    %38 = arith.cmpi sge, %36, %37 : vector<18x1xi32>
    %cst_16 = arith.constant 0.000000e+00 : f32
    %39 = vector.shape_cast %38 : vector<18x1xi1> to vector<18x1xi1>
    %40 = vector.broadcast %39 : vector<18x1xi1> to vector<18x128xi1>
    %41 = vector.broadcast %cst_16 : f32 to vector<18x128xf32>
    %42 = arith.select %40, %31, %41 : vector<18x128xi1>, vector<18x128xf32>
    %43 = vector.extract_strided_slice %42 {offsets = [0, 0], sizes = [16, 128], strides = [1, 1]} : vector<18x128xf32> to vector<16x128xf32>
    %44 = vector.extract_strided_slice %42 {offsets = [1, 0], sizes = [16, 128], strides = [1, 1]} : vector<18x128xf32> to vector<16x128xf32>
    %45 = vector.extract_strided_slice %42 {offsets = [2, 0], sizes = [16, 128], strides = [1, 1]} : vector<18x128xf32> to vector<16x128xf32>
    %46 = tpu.concatenate %43, %44, %45 in 1 : vector<16x128xf32>, vector<16x128xf32>, vector<16x128xf32> -> vector<16x384xf32>
    %c0_17 = arith.constant 0 : index
    %c0_18 = arith.constant 0 : index
    %47 = vector.load %arg5[%c0_17, %c0_18] : memref<384x128xf32, #tpu.memory_space<vmem>>, vector<384x128xf32>
    %cst_19 = arith.constant dense<0.000000e+00> : vector<16x128xf32>
    %48 = tpu.matmul %46, %47, %cst_19 {dimension_numbers = #tpu.dot_dimension_numbers<[1], [0], [0], [1], [0, 0, 1, 1], [], []>} : vector<16x384xf32>, vector<384x128xf32>, vector<16x128xf32> -> vector<16x128xf32>
    %c0_20 = arith.constant 0 : index
    %c0_21 = arith.constant 0 : index
    %49 = vector.load %arg6[%c0_20, %c0_21] : memref<1x128xf32, #tpu.memory_space<vmem>>, vector<1x128xf32>
    %50 = vector.broadcast %49 : vector<1x128xf32> to vector<16x128xf32>
    %51 = arith.addf %48, %50 : vector<16x128xf32>
    %52 = arith.addf %51, %11 : vector<16x128xf32>
    %53 = vector.shape_cast %52 : vector<16x128xf32> to vector<1x16x128xf32>
    %c0_22 = arith.constant 0 : index
    %c0_23 = arith.constant 0 : index
    %c0_24 = arith.constant 0 : index
    %54 = vector.load %arg7[%c0_22, %c0_23, %c0_24] : memref<1x16x128xf32, #tpu.memory_space<vmem>>, vector<1x16x128xf32>
    tpu.vector_store %arg7[%c0_22, %c0_23, %c0_24], %53 {strides = array<i32>} : memref<1x16x128xf32, #tpu.memory_space<vmem>>, vector<1x16x128xf32>,
    return
  }
  func.func @transform_0(%arg0: i32) -> (i32, i32, i32) {
    %c0_i32 = arith.constant 0 : i32
    %c0_i32_0 = arith.constant 0 : i32
    %c0_i32_1 = arith.constant 0 : i32
    return %arg0, %c0_i32, %c0_i32_0 : i32, i32, i32
  }
  func.func @transform_1(%arg0: i32) -> (i32, i32, i32) {
    %c0_i32 = arith.constant 0 : i32
    %c0_i32_0 = arith.constant 0 : i32
    %c0_i32_1 = arith.constant 0 : i32
    return %arg0, %c0_i32, %c0_i32_0 : i32, i32, i32
  }
  func.func @transform_2(%arg0: i32) -> (i32, i32) {
    %c0_i32 = arith.constant 0 : i32
    %c0_i32_0 = arith.constant 0 : i32
    %c0_i32_1 = arith.constant 0 : i32
    return %c0_i32, %c0_i32_0 : i32, i32
  }
  func.func @transform_3(%arg0: i32) -> (i32, i32) {
    %c0_i32 = arith.constant 0 : i32
    %c0_i32_0 = arith.constant 0 : i32
    %c0_i32_1 = arith.constant 0 : i32
    return %c0_i32, %c0_i32_0 : i32, i32
  }
  func.func @transform_4(%arg0: i32) -> (i32, i32) {
    %c0_i32 = arith.constant 0 : i32
    %c0_i32_0 = arith.constant 0 : i32
    %c0_i32_1 = arith.constant 0 : i32
    return %c0_i32, %c0_i32_0 : i32, i32
  }
  func.func @transform_5(%arg0: i32) -> (i32, i32) {
    %c0_i32 = arith.constant 0 : i32
    %c0_i32_0 = arith.constant 0 : i32
    %c0_i32_1 = arith.constant 0 : i32
    return %c0_i32, %c0_i32_0 : i32, i32
  }
  func.func @transform_6(%arg0: i32) -> (i32, i32, i32) {
    %c0_i32 = arith.constant 0 : i32
    %c0_i32_0 = arith.constant 0 : i32
    %c0_i32_1 = arith.constant 0 : i32
    return %arg0, %c0_i32, %c0_i32_0 : i32, i32, i32
  }
}

</mosaic_0001>

<llo_original>
// kernel: tpu_custom_call.1
$region0: #{tpu_custom_call.1}
  #allocation0 [shape = 'u32[]', space=smem, size = 0x4, offset = 0x4, fixed_abs, tag = 'smem constant byte address 0x4 - core index']
  #allocation1 [shape = 'u32[144,128]{1,0:T(1,128)}', space=vmem, size = 0x12000, scoped, tag = 'internal scratch']
  %s0 = inlined_call_operand.hbm [shape: f32[4,16,128], index: 0, kind: input, shape index: {}]
  %s1 = inlined_call_operand.vmem [shape: f32[4,5,128], index: 1, kind: input, shape index: {}]
  %s2 = inlined_call_operand.hbm [shape: f32[512,128], index: 2, kind: input, shape index: {}]
  %s3 = inlined_call_operand.vmem [shape: f32[1,128], index: 3, kind: input, shape index: {}]
  %s4 = inlined_call_operand.hbm [shape: f32[384,128], index: 4, kind: input, shape index: {}]
  %s5 = inlined_call_operand.vmem [shape: f32[1,128], index: 5, kind: input, shape index: {}]
  %s6 = inlined_call_operand.hbm [shape: f32[4,16,128], index: 6, kind: output, shape index: {}]
  %s7 = sld [smem:[#allocation0]]
  $region69: #{tpu_custom_call.1} parent=0
    _
  %s9 = ssub.s32 1, %s7
  %s10 = scalar_select 0, %s9, %s7
  $region1: #{tpu_custom_call.1} parent=0
    #allocation2 [shape = 'u8[16384]{0}', space=vmem, size = 0x4000, scoped, tag = 'input window, operand 0']
    #allocation3 [shape = 's32[2]{0}', space=sflag, size = 0x8, scoped, tag = 'scoped memory for tpu_custom_call.1']
    #allocation4 [shape = 's32[2]{0}', space=sflag, size = 0x8, scoped, tag = 'scoped memory for tpu_custom_call.1']
    #allocation5 [shape = 'u8[262144]{0}', space=vmem, size = 0x40000, scoped, tag = 'input window, operand 2, single buffered']
    #allocation6 [shape = 's32[1]{0}', space=sflag, size = 0x4, scoped, tag = 'scoped memory for tpu_custom_call.1']
    #allocation7 [shape = 'u8[196608]{0}', space=vmem, size = 0x30000, scoped, tag = 'input window, operand 4, single buffered']
    #allocation8 [shape = 'u8[16384]{0}', space=vmem, size = 0x4000, scoped, tag = 'output window, operand 0']
    %11 = vsyncpa [#allocation3], 0
    %s12 = scalar_lea.sflag [#allocation3], 1
    %13 = vsyncpa %s12, 0
    %14 = vsyncpa [#allocation6], 0
    %15 = vsyncpa [#allocation4], 0
    %s16 = scalar_lea.sflag [#allocation4], 1
    %17 = vsyncpa %s16, 0
    loop: start=0, step=1, limit=6
    $region2: #{tpu_custom_call.1} parent=1 // loop_pre_header
      _
    $region3: #{tpu_custom_call.1} parent=1 // loop_header
      %s19 = sphi 0, %s23
      %p20 = scmp.ge.s32.totalorder %s19, 6
      %s29 = sphi 0, %s31
      %s32 = sphi 0, %s29
      %s33 = sphi 0, %s32
      %s49 = sphi 0, %s33
      %s55 = sphi 0, %s57
      %s58 = sphi 0, %s55
      %s59 = sphi 0, %s58
      %s75 = sphi 0, %s59
      %s79 = sphi 0, %s79
      %s81 = sphi 0, %s79
      %s82 = sphi 0, %s81
      %s96 = sphi 0, %s82
      %s100 = sphi 0, %s100
      %s102 = sphi 0, %s100
      %s103 = sphi 0, %s102
      %s117 = sphi 0, %s103
      %s121 = sphi 0, %s121
      %s123 = sphi 0, %s121
      %s124 = sphi 0, %s123
      %s138 = sphi 0, %s124
      %s142 = sphi 0, %s142
      %s144 = sphi 0, %s142
      %s145 = sphi 0, %s144
      %s159 = sphi 0, %s145
      %s165 = sphi 0, %s167
      %s168 = sphi 0, %s165
      %s169 = sphi 0, %s168
      %s185 = sphi 0, %s169
    $region4: #{tpu_custom_call.1} parent=1 // loop_header_branch
      %22 = sbr.rel (%p20) target = $region8
    $region5: #{tpu_custom_call.1} parent=1 // loop_body
      %s24 = ssub.s32 %s19, 1
      %s25 = ssub.s32 %s19, 2
      %s26 = sadd.s32 %s19, 1
      %s27 = ssub.s32 %s19, %s26
      %p28 = scmp.eq.s32.totalorder %s27, 0
      %s30 = sadd.s32 %s29, 1
      %s31 = scalar_select %p28, %s29, %s30
      %p34 = pneg %p28
      %p35 = scmp.eq.s32.totalorder %s19, 3
      %p36 = por %p34, %p35
      %p37 = scmp.ne.s32.totalorder %s29, %s32
      %p38 = scmp.eq.s32.totalorder %s19, 0
      %p39 = por %p37, %p38
      %p40 = scmp.ne.s32.totalorder %s29, %s32
      %p41 = scmp.eq.s32.totalorder %s24, 3
      %p42 = por %p40, %p41
      %p43 = scmp.ne.s32.totalorder %s32, %s33
      %p44 = scmp.eq.s32.totalorder %s24, 0
      %p45 = por %p43, %p44
      %p46 = scmp.ne.s32.totalorder %s32, %s33
      %p47 = scmp.eq.s32.totalorder %s25, 3
      %p48 = por %p46, %p47
      %p50 = scmp.ne.s32.totalorder %s33, %s49
      %p51 = scmp.eq.s32.totalorder %s25, 0
      %p52 = por %p50, %p51
      %s53 = ssub.s32 %s19, %s26
      %p54 = scmp.eq.s32.totalorder %s53, 0
      %s56 = sadd.s32 %s55, 1
      %s57 = scalar_select %p54, %s55, %s56
      %p60 = pneg %p54
      %p61 = scmp.eq.s32.totalorder %s19, 3
      %p62 = por %p60, %p61
      %p63 = scmp.ne.s32.totalorder %s55, %s58
      %p64 = scmp.eq.s32.totalorder %s19, 0
      %p65 = por %p63, %p64
      %p66 = scmp.ne.s32.totalorder %s55, %s58
      %p67 = scmp.eq.s32.totalorder %s24, 3
      %p68 = por %p66, %p67
      %p69 = scmp.ne.s32.totalorder %s58, %s59
      %p70 = scmp.eq.s32.totalorder %s24, 0
      %p71 = por %p69, %p70
      %p72 = scmp.ne.s32.totalorder %s58, %s59
      %p73 = scmp.eq.s32.totalorder %s25, 3
      %p74 = por %p72, %p73
      %p76 = scmp.ne.s32.totalorder %s59, %s75
      %p77 = scmp.eq.s32.totalorder %s25, 0
      %p78 = por %p76, %p77
      %s80 = sadd.s32 %s79, 1
      %p83 = scmp.eq.s32.totalorder %s19, 3
      %p84 = scmp.ne.s32.totalorder %s79, %s81
      %p85 = scmp.eq.s32.totalorder %s19, 0
      %p86 = por %p84, %p85
      %p87 = scmp.ne.s32.totalorder %s79, %s81
      %p88 = scmp.eq.s32.totalorder %s24, 3
      %p89 = por %p87, %p88
      %p90 = scmp.ne.s32.totalorder %s81, %s82
      %p91 = scmp.eq.s32.totalorder %s24, 0
      %p92 = por %p90, %p91
      %p93 = scmp.ne.s32.totalorder %s81, %s82
      %p94 = scmp.eq.s32.totalorder %s25, 3
      %p95 = por %p93, %p94
      %p97 = scmp.ne.s32.totalorder %s82, %s96
      %p98 = scmp.eq.s32.totalorder %s25, 0
      %p99 = por %p97, %p98
      %s101 = sadd.s32 %s100, 1
      %p104 = scmp.eq.s32.totalorder %s19, 3
      %p105 = scmp.ne.s32.totalorder %s100, %s102
      %p106 = scmp.eq.s32.totalorder %s19, 0
      %p107 = por %p105, %p106
      %p108 = scmp.ne.s32.totalorder %s100, %s102
      %p109 = scmp.eq.s32.totalorder %s24, 3
      %p110 = por %p108, %p109
      %p111 = scmp.ne.s32.totalorder %s102, %s103
      %p112 = scmp.eq.s32.totalorder %s24, 0
      %p113 = por %p111, %p112
      %p114 = scmp.ne.s32.totalorder %s102, %s103
      %p115 = scmp.eq.s32.totalorder %s25, 3
      %p116 = por %p114, %p115
      %p118 = scmp.ne.s32.totalorder %s103, %s117
      %p119 = scmp.eq.s32.totalorder %s25, 0
      %p120 = por %p118, %p119
      %s122 = sadd.s32 %s121, 1
      %p125 = scmp.eq.s32.totalorder %s19, 3
      %p126 = scmp.ne.s32.totalorder %s121, %s123
      %p127 = scmp.eq.s32.totalorder %s19, 0
      %p128 = por %p126, %p127
      %p129 = scmp.ne.s32.totalorder %s121, %s123
      %p130 = scmp.eq.s32.totalorder %s24, 3
      %p131 = por %p129, %p130
      %p132 = scmp.ne.s32.totalorder %s123, %s124
      %p133 = scmp.eq.s32.totalorder %s24, 0
      %p134 = por %p132, %p133
      %p135 = scmp.ne.s32.totalorder %s123, %s124
      %p136 = scmp.eq.s32.totalorder %s25, 3
      %p137 = por %p135, %p136
      %p139 = scmp.ne.s32.totalorder %s124, %s138
      %p140 = scmp.eq.s32.totalorder %s25, 0
      %p141 = por %p139, %p140
      %s143 = sadd.s32 %s142, 1
      %p146 = scmp.eq.s32.totalorder %s19, 3
      %p147 = scmp.ne.s32.totalorder %s142, %s144
      %p148 = scmp.eq.s32.totalorder %s19, 0
      %p149 = por %p147, %p148
      %p150 = scmp.ne.s32.totalorder %s142, %s144
      %p151 = scmp.eq.s32.totalorder %s24, 3
      %p152 = por %p150, %p151
      %p153 = scmp.ne.s32.totalorder %s144, %s145
      %p154 = scmp.eq.s32.totalorder %s24, 0
      %p155 = por %p153, %p154
      %p156 = scmp.ne.s32.totalorder %s144, %s145
      %p157 = scmp.eq.s32.totalorder %s25, 3
      %p158 = por %p156, %p157
      %p160 = scmp.ne.s32.totalorder %s145, %s159
      %p161 = scmp.eq.s32.totalorder %s25, 0
      %p162 = por %p160, %p161
      %s163 = ssub.s32 %s19, %s26
      %p164 = scmp.eq.s32.totalorder %s163, 0
      %s166 = sadd.s32 %s165, 1
      %s167 = scalar_select %p164, %s165, %s166
      %p170 = pneg %p164
      %p171 = scmp.eq.s32.totalorder %s19, 3
      %p172 = por %p170, %p171
      %p173 = scmp.ne.s32.totalorder %s165, %s168
      %p174 = scmp.eq.s32.totalorder %s19, 0
      %p175 = por %p173, %p174
      %p176 = scmp.ne.s32.totalorder %s165, %s168
      %p177 = scmp.eq.s32.totalorder %s24, 3
      %p178 = por %p176, %p177
      %p179 = scmp.ne.s32.totalorder %s168, %s169
      %p180 = scmp.eq.s32.totalorder %s24, 0
      %p181 = por %p179, %p180
      %p182 = scmp.ne.s32.totalorder %s168, %s169
      %p183 = scmp.eq.s32.totalorder %s25, 3
      %p184 = por %p182, %p183
      %p186 = scmp.ne.s32.totalorder %s169, %s185
      %p187 = scmp.eq.s32.totalorder %s25, 0
      %p188 = por %p186, %p187
      %p189 = scmp.le.s32.totalorder 1, %s19
      %p190 = scmp.lt.s32.totalorder %s19, 5
      %p191 = pnand %p189, %p190
      %p192 = pneg %p191
      // Predicated region
      $region9: #{tpu_custom_call.1} parent=5 // pred_check
        _
      $region10: #{tpu_custom_call.1} parent=5 // pred_check_branch
        %194 = sbr.rel (%p191) target = $region12
      $region11: #{tpu_custom_call.1} parent=5 // pred_region
        %s195 = ssub.s32 %s19, 1
        // Predicated region
        $region13: #{tpu_custom_call.1} parent=11 // pred_check
          %p196 = pneg %p92
        $region14: #{tpu_custom_call.1} parent=11 // pred_check_branch
          %198 = sbr.rel (%p196) target = $region16
        $region15: #{tpu_custom_call.1} parent=11 // pred_region
          %s200 = ssub.s32 8192, 8192
          %201 = vsyncadd [#allocation6], %s200
          %s202 = sshll.u32 [#allocation5], 4
          %s203 = int_to_ptr.vmem [resolvable:$true] %s202
          %208 = dma.hbm_to_vmem [thread:$0]  %s2, 8192, %s203, [#allocation6], 128, 128, 8
        $region16: #{tpu_custom_call.1} parent=11 // pred_fallthru
          _
        // Predicated region
        $region17: #{tpu_custom_call.1} parent=11 // pred_check
          %p209 = pneg %p113
        $region18: #{tpu_custom_call.1} parent=11 // pred_check_branch
          %211 = sbr.rel (%p209) target = $region20
        $region19: #{tpu_custom_call.1} parent=11 // pred_region
          _
        $region20: #{tpu_custom_call.1} parent=11 // pred_fallthru
          _
        // Predicated region
        $region21: #{tpu_custom_call.1} parent=11 // pred_check
          %p212 = pneg %p134
        $region22: #{tpu_custom_call.1} parent=11 // pred_check_branch
          %214 = sbr.rel (%p212) target = $region24
        $region23: #{tpu_custom_call.1} parent=11 // pred_region
          %s216 = ssub.s32 6144, 6144
          %217 = vsyncadd [#allocation6], %s216
          %s218 = sshll.u32 [#allocation7], 4
          %s219 = int_to_ptr.vmem [resolvable:$true] %s218
          %224 = dma.hbm_to_vmem [thread:$0]  %s4, 6144, %s219, [#allocation6], 128, 128, 8
        $region24: #{tpu_custom_call.1} parent=11 // pred_fallthru
          _
        // Predicated region
        $region25: #{tpu_custom_call.1} parent=11 // pred_check
          %p225 = pneg %p155
        $region26: #{tpu_custom_call.1} parent=11 // pred_check_branch
          %227 = sbr.rel (%p225) target = $region28
        $region27: #{tpu_custom_call.1} parent=11 // pred_region
          _
        $region28: #{tpu_custom_call.1} parent=11 // pred_fallthru
          _
      $region12: #{tpu_custom_call.1} parent=5 // pred_fallthru
        _
      %p228 = scmp.lt.s32.totalorder %s19, 4
      // Predicated region
      $region29: #{tpu_custom_call.1} parent=5 // pred_check
        %p229 = pneg %p228
      $region30: #{tpu_custom_call.1} parent=5 // pred_check_branch
        %231 = sbr.rel (%p229) target = $region32
      $region31: #{tpu_custom_call.1} parent=5 // pred_region
        // Predicated region
        $region33: #{tpu_custom_call.1} parent=31 // pred_check
          %p232 = pneg %p39
        $region34: #{tpu_custom_call.1} parent=31 // pred_check_branch
          %234 = sbr.rel (%p232) target = $region36
        $region35: #{tpu_custom_call.1} parent=31 // pred_region
          %s235 = sand.u32 %s29, 1
          %s236 = scalar_lea.sflag [#allocation3], %s235
          %s237 = sand.u32 %s29, 1
          %s238 = smul.addr %s237, 16
          %s239 = scalar_lea.vmem [#allocation2], %s238
          %s241 = ssub.s32 256, 256
          %242 = vsyncadd %s236, %s241
          %s243 = smul.addr %s19, 2
          %s244 = smul.addr %s243, 128
          %s245 = scalar_lea.hbm %s0, %s244
          %s246 = sshll.u32 %s239, 4
          %s247 = int_to_ptr.vmem [resolvable:$true] %s246
          %252 = dma.hbm_to_vmem [thread:$0]  %s245, 256, %s247, %s236, 128, 128, 8
        $region36: #{tpu_custom_call.1} parent=31 // pred_fallthru
          _
        // Predicated region
        $region37: #{tpu_custom_call.1} parent=31 // pred_check
          %p253 = pneg %p65
        $region38: #{tpu_custom_call.1} parent=31 // pred_check_branch
          %255 = sbr.rel (%p253) target = $region40
        $region39: #{tpu_custom_call.1} parent=31 // pred_region
          %p256 = scmp.lt.s32.totalorder %s19, 3
          %s257 = scalar_select %p256, %s19, 3
          %s258 = smul.addr %s257, 8
          %s259 = scalar_lea.vmem %s1, %s258
        $region40: #{tpu_custom_call.1} parent=31 // pred_fallthru
          _
      $region32: #{tpu_custom_call.1} parent=5 // pred_fallthru
        _
      %p260 = scmp.le.s32.totalorder 1, %s19
      %p261 = scmp.lt.s32.totalorder %s19, 5
      %p262 = pnand %p260, %p261
      %p263 = pneg %p262
      // Predicated region
      $region41: #{tpu_custom_call.1} parent=5 // pred_check
        _
      $region42: #{tpu_custom_call.1} parent=5 // pred_check_branch
        %265 = sbr.rel (%p262) target = $region44
      $region43: #{tpu_custom_call.1} parent=5 // pred_region
        %s266 = ssub.s32 %s19, 1
        %s267 = sand.u32 %s32, 1
        %s268 = scalar_lea.sflag [#allocation3], %s267
        %s269 = sand.u32 %s32, 1
        %s270 = smul.addr %s269, 16
        %s271 = scalar_lea.vmem [#allocation2], %s270
        // Predicated region
        $region45: #{tpu_custom_call.1} parent=43 // pred_check
          %p272 = pneg %p45
        $region46: #{tpu_custom_call.1} parent=43 // pred_check_branch
          %274 = sbr.rel (%p272) target = $region48
        $region47: #{tpu_custom_call.1} parent=43 // pred_region
          %275 = dma.done %s268, 256
        $region48: #{tpu_custom_call.1} parent=43 // pred_fallthru
          _
        // Predicated region
        $region49: #{tpu_custom_call.1} parent=43 // pred_check
          %p276 = pneg %p92
        $region50: #{tpu_custom_call.1} parent=43 // pred_check_branch
          %278 = sbr.rel (%p276) target = $region52
        $region51: #{tpu_custom_call.1} parent=43 // pred_region
          %279 = dma.done [#allocation6], 8192
        $region52: #{tpu_custom_call.1} parent=43 // pred_fallthru
          _
        // Predicated region
        $region53: #{tpu_custom_call.1} parent=43 // pred_check
          %p280 = pneg %p134
        $region54: #{tpu_custom_call.1} parent=43 // pred_check_branch
          %282 = sbr.rel (%p280) target = $region56
        $region55: #{tpu_custom_call.1} parent=43 // pred_region
          %283 = dma.done [#allocation6], 6144
        $region56: #{tpu_custom_call.1} parent=43 // pred_fallthru
          _
        %s284 = sand.u32 %s32, 1
        %s285 = scalar_lea.sflag [#allocation3], %s284
        %s286 = sand.u32 %s32, 1
        %s287 = smul.addr %s286, 16
        %s288 = scalar_lea.vmem [#allocation2], %s287
        %p289 = pneg %p45
        %p290 = pneg %p42
        %p291 = scmp.lt.s32.totalorder %s24, 3
        %s292 = scalar_select %p291, %s24, 3
        %s293 = smul.addr %s292, 8
        %s294 = scalar_lea.vmem %s1, %s293
        %p295 = pneg %p71
        %p296 = pneg %p68
        %p297 = pneg %p92
        %p298 = pneg %p89
        %p299 = pneg %p113
        %p300 = pneg %p110
        %p301 = pneg %p134
        %p302 = pneg %p131
        %p303 = pneg %p155
        %p304 = pneg %p152
        %p305 = pneg %p181
        %p306 = pneg %p178
        %s307 = sand.u32 %s168, 1
        %s308 = scalar_lea.sflag [#allocation4], %s307
        %s309 = sand.u32 %s168, 1
        %s310 = smul.addr %s309, 16
        %s311 = scalar_lea.vmem [#allocation8], %s310
        %p312 = scmp.lt.s32.totalorder %s24, 3
        %s313 = scalar_select %p312, %s24, 3
        %s314 = smul.addr %s313, 8
        %s315 = scalar_lea.vmem %s1, %s314
        %p316 = scmp.lt.s32.totalorder %s24, 0
        %s317 = ssub.s32 0, %s24
        %s318 = scalar_select %p316, %s317, %s24
        %s319 = sand.u32 %s318, 1
        %s320 = ssub.s32 0, %s319
        %s321 = scalar_select %p316, %s320, %s319
        %p322 = scmp.ne.s32.totalorder %s321, 0
        %p323 = scmp.lt.s32.totalorder %s321, 0
        %p324 = pnand %p323, %p322
        %p325 = pneg %p324
        %s326 = sadd.s32 %s321, 2
        %s327 = scalar_select %p325, %s326, %s321
        %v328 = vld [vmem:[%s271] sm:$0xff]
        %v329 = vld [vmem:[%s271 + $0x8] sm:$0xff]
        %v330 = vld [vmem:[%s315] sm:$0x1f]
        %vm333 = vcmask 1041408
        %v334 = vrot.slane %v328, 6
        %v335 = vrot.slane %v329, 6
        %v336 = vsel %vm333, %v334, %v335
        %v340 = vsel %vm333, %v330, %v334
        %v341 = vsel %vm333, %v335, %v330
        %vm344 = vcmask 1046528
        %v345 = vrot.slane %v340, 1
        %v346 = vrot.slane %v336, 1
        %v347 = vsel %vm344, %v345, %v346
        %v348 = vrot.slane %v341, 1
        %v349 = vsel %vm344, %v346, %v348
        %vm353 = vcmask 1045504
        %v354 = vrot.slane %v340, 2
        %v355 = vrot.slane %v336, 2
        %v356 = vsel %vm353, %v354, %v355
        %v357 = vrot.slane %v341, 2
        %v358 = vsel %vm353, %v355, %v357
        %vm362 = vcmask 1044480
        %v363 = vrot.slane %v340, 3
        %v364 = vrot.slane %v336, 3
        %v365 = vsel %vm362, %v363, %v364
        %v366 = vrot.slane %v341, 3
        %v367 = vsel %vm362, %v364, %v366
        %v371 = vld [vmem:[#allocation5] sm:$0xff]
        %v372 = vld [vmem:[#allocation5 + $0x8] sm:$0xff]
        %v373 = vld [vmem:[#allocation5 + $0x10] sm:$0xff]
        %v374 = vld [vmem:[#allocation5 + $0x18] sm:$0xff]
        %v375 = vld [vmem:[#allocation5 + $0x20] sm:$0xff]
        %v376 = vld [vmem:[#allocation5 + $0x28] sm:$0xff]
        %v377 = vld [vmem:[#allocation5 + $0x30] sm:$0xff]
        %v378 = vld [vmem:[#allocation5 + $0x38] sm:$0xff]
        %v379 = vld [vmem:[#allocation5 + $0x40] sm:$0xff]
        %v380 = vld [vmem:[#allocation5 + $0x48] sm:$0xff]
        %v381 = vld [vmem:[#allocation5 + $0x50] sm:$0xff]
        %v382 = vld [vmem:[#allocation5 + $0x58] sm:$0xff]
        %v383 = vld [vmem:[#allocation5 + $0x60] sm:$0xff]
        %v384 = vld [vmem:[#allocation5 + $0x68] sm:$0xff]
        %v385 = vld [vmem:[#allocation5 + $0x70] sm:$0xff]
        %v386 = vld [vmem:[#allocation5 + $0x78] sm:$0xff]
        %v387 = vld [vmem:[#allocation5 + $0x80] sm:$0xff]
        %v388 = vld [vmem:[#allocation5 + $0x88] sm:$0xff]
        %v389 = vld [vmem:[#allocation5 + $0x90] sm:$0xff]
        %v390 = vld [vmem:[#allocation5 + $0x98] sm:$0xff]
        %v391 = vld [vmem:[#allocation5 + $0xa0] sm:$0xff]
        %v392 = vld [vmem:[#allocation5 + $0xa8] sm:$0xff]
        %v393 = vld [vmem:[#allocation5 + $0xb0] sm:$0xff]
        %v394 = vld [vmem:[#allocation5 + $0xb8] sm:$0xff]
        %v395 = vld [vmem:[#allocation5 + $0xc0] sm:$0xff]
        %v396 = vld [vmem:[#allocation5 + $0xc8] sm:$0xff]
        %v397 = vld [vmem:[#allocation5 + $0xd0] sm:$0xff]
        %v398 = vld [vmem:[#allocation5 + $0xd8] sm:$0xff]
        %v399 = vld [vmem:[#allocation5 + $0xe0] sm:$0xff]
        %v400 = vld [vmem:[#allocation5 + $0xe8] sm:$0xff]
        %v401 = vld [vmem:[#allocation5 + $0xf0] sm:$0xff]
        %v402 = vld [vmem:[#allocation5 + $0xf8] sm:$0xff]
        %v403 = vld [vmem:[#allocation5 + $0x100] sm:$0xff]
        %v404 = vld [vmem:[#allocation5 + $0x108] sm:$0xff]
        %v405 = vld [vmem:[#allocation5 + $0x110] sm:$0xff]
        %v406 = vld [vmem:[#allocation5 + $0x118] sm:$0xff]
        %v407 = vld [vmem:[#allocation5 + $0x120] sm:$0xff]
        %v408 = vld [vmem:[#allocation5 + $0x128] sm:$0xff]
        %v409 = vld [vmem:[#allocation5 + $0x130] sm:$0xff]
        %v410 = vld [vmem:[#allocation5 + $0x138] sm:$0xff]
        %v411 = vld [vmem:[#allocation5 + $0x140] sm:$0xff]
        %v412 = vld [vmem:[#allocation5 + $0x148] sm:$0xff]
        %v413 = vld [vmem:[#allocation5 + $0x150] sm:$0xff]
        %v414 = vld [vmem:[#allocation5 + $0x158] sm:$0xff]
        %v415 = vld [vmem:[#allocation5 + $0x160] sm:$0xff]
        %v416 = vld [vmem:[#allocation5 + $0x168] sm:$0xff]
        %v417 = vld [vmem:[#allocation5 + $0x170] sm:$0xff]
        %v418 = vld [vmem:[#allocation5 + $0x178] sm:$0xff]
        %v419 = vld [vmem:[#allocation5 + $0x180] sm:$0xff]
        %v420 = vld [vmem:[#allocation5 + $0x188] sm:$0xff]
        %v421 = vld [vmem:[#allocation5 + $0x190] sm:$0xff]
        %v422 = vld [vmem:[#allocation5 + $0x198] sm:$0xff]
        %v423 = vld [vmem:[#allocation5 + $0x1a0] sm:$0xff]
        %v424 = vld [vmem:[#allocation5 + $0x1a8] sm:$0xff]
        %v425 = vld [vmem:[#allocation5 + $0x1b0] sm:$0xff]
        %v426 = vld [vmem:[#allocation5 + $0x1b8] sm:$0xff]
        %v427 = vld [vmem:[#allocation5 + $0x1c0] sm:$0xff]
        %v428 = vld [vmem:[#allocation5 + $0x1c8] sm:$0xff]
        %v429 = vld [vmem:[#allocation5 + $0x1d0] sm:$0xff]
        %v430 = vld [vmem:[#allocation5 + $0x1d8] sm:$0xff]
        %v431 = vld [vmem:[#allocation5 + $0x1e0] sm:$0xff]
        %v432 = vld [vmem:[#allocation5 + $0x1e8] sm:$0xff]
        %v433 = vld [vmem:[#allocation5 + $0x1f0] sm:$0xff]
        %v434 = vld [vmem:[#allocation5 + $0x1f8] sm:$0xff]
        %v435 = vld [vmem:[%s3] sm:$0x1]
        %v437 = vlaneseq
        %v438 = vshrl.u32 %v437, 7
        %v439 = vsub.s32 0, %v438
        %v440 = vrot.slane %v435, %v439
        %442 = vmatprep.subr.mxu0 0.0
        %443 = vmatpush1.msra.mxu0 %v386
        %444 = vmatprep.subr.mxu0 0.0
        %445 = vmatpush1.msra.mxu0 %v385
        %446 = vmatprep.subr.mxu0 0.0
        %447 = vmatpush1.msra.mxu0 %v384
        %448 = vmatprep.subr.mxu0 0.0
        %449 = vmatpush1.msra.mxu0 %v383
        %450 = vmatprep.subr.mxu0 0.0
        %451 = vmatpush1.msra.mxu0 %v382
        %452 = vmatprep.subr.mxu0 0.0
        %453 = vmatpush1.msra.mxu0 %v381
        %454 = vmatprep.subr.mxu0 0.0
        %455 = vmatpush1.msra.mxu0 %v380
        %456 = vmatprep.subr.mxu0 0.0
        %457 = vmatpush1.msra.mxu0 %v379
        %458 = vmatprep.subr.mxu0 0.0
        %459 = vmatpush1.msra.mxu0 %v378
        %460 = vmatprep.subr.mxu0 0.0
        %461 = vmatpush1.msra.mxu0 %v377
        %462 = vmatprep.subr.mxu0 0.0
        %463 = vmatpush1.msra.mxu0 %v376
        %464 = vmatprep.subr.mxu0 0.0
        %465 = vmatpush1.msra.mxu0 %v375
        %466 = vmatprep.subr.mxu0 0.0
        %467 = vmatpush1.msra.mxu0 %v374
        %468 = vmatprep.subr.mxu0 0.0
        %469 = vmatpush1.msra.mxu0 %v373
        %470 = vmatprep.subr.mxu0 0.0
        %471 = vmatpush1.msra.mxu0 %v372
        %472 = vmatprep.subr.mxu0 0.0
        %473 = vmatpush1.msra.mxu0 %v371
        %474 = vmatprep.subr.mxu0 0.0
        %475 = vmatpush2.msra.mxu0 %v402
        %476 = vmatprep.subr.mxu0 0.0
        %477 = vmatpush2.msra.mxu0 %v401
        %478 = vmatprep.subr.mxu0 0.0
        %479 = vmatpush2.msra.mxu0 %v400
        %480 = vmatprep.subr.mxu0 0.0
        %481 = vmatpush2.msra.mxu0 %v399
        %482 = vmatprep.subr.mxu0 0.0
        %483 = vmatpush2.msra.mxu0 %v398
        %484 = vmatprep.subr.mxu0 0.0
        %485 = vmatpush2.msra.mxu0 %v397
        %486 = vmatprep.subr.mxu0 0.0
        %487 = vmatpush2.msra.mxu0 %v396
        %488 = vmatprep.subr.mxu0 0.0
        %489 = vmatpush2.msra.mxu0 %v395
        %490 = vmatprep.subr.mxu0 0.0
        %491 = vmatpush2.msra.mxu0 %v394
        %492 = vmatprep.subr.mxu0 0.0
        %493 = vmatpush2.msra.mxu0 %v393
        %494 = vmatprep.subr.mxu0 0.0
        %495 = vmatpush2.msra.mxu0 %v392
        %496 = vmatprep.subr.mxu0 0.0
        %497 = vmatpush2.msra.mxu0 %v391
        %498 = vmatprep.subr.mxu0 0.0
        %499 = vmatpush2.msra.mxu0 %v390
        %500 = vmatprep.subr.mxu0 0.0
        %501 = vmatpush2.msra.mxu0 %v389
        %502 = vmatprep.subr.mxu0 0.0
        %503 = vmatpush2.msra.mxu0 %v388
        %504 = vmatprep.subr.mxu0 0.0
        %505 = vmatpush2.msra.mxu0 %v387
        %506 = vmatprep.mubr.f32.mxu0 %v347
        %507 = vmatmul.mubr.f32.gmra.mxu0 %v340
        %v508 = vpop.f32.mrf.mxu0
        %v509 = vadd.f32 %v440, %v508
        %v510 = vpop.f32.mrf.mxu0
        %511 = vmatprep.mubr.f32.mxu0 %v349
        %512 = vmatmul.mubr.f32.gmra.mxu0 %v336
        %v513 = vpop.f32.mrf.mxu0
        %v514 = vadd.f32 %v440, %v513
        %v515 = vpop.f32.mrf.mxu0
        %516 = vmatprep.mubr.f32.mxu0 %v348
        %517 = vmatmul.mubr.f32.gmra.mxu0 %v341
        %v518 = vpop.f32.mrf.mxu0
        %v519 = vadd.f32 %v440, %v518
        %v520 = vpop.f32.mrf.mxu0
        %521 = vdwg.mxu0
        %522 = vmatprep.subr.mxu0 0.0
        %523 = vmatpush1.msra.mxu0 %v418
        %524 = vmatprep.subr.mxu0 0.0
        %525 = vmatpush1.msra.mxu0 %v417
        %526 = vmatprep.subr.mxu0 0.0
        %527 = vmatpush1.msra.mxu0 %v416
        %528 = vmatprep.subr.mxu0 0.0
        %529 = vmatpush1.msra.mxu0 %v415
        %530 = vmatprep.subr.mxu0 0.0
        %531 = vmatpush1.msra.mxu0 %v414
        %532 = vmatprep.subr.mxu0 0.0
        %533 = vmatpush1.msra.mxu0 %v413
        %534 = vmatprep.subr.mxu0 0.0
        %535 = vmatpush1.msra.mxu0 %v412
        %536 = vmatprep.subr.mxu0 0.0
        %537 = vmatpush1.msra.mxu0 %v411
        %538 = vmatprep.subr.mxu0 0.0
        %539 = vmatpush1.msra.mxu0 %v410
        %540 = vmatprep.subr.mxu0 0.0
        %541 = vmatpush1.msra.mxu0 %v409
        %542 = vmatprep.subr.mxu0 0.0
        %543 = vmatpush1.msra.mxu0 %v408
        %544 = vmatprep.subr.mxu0 0.0
        %545 = vmatpush1.msra.mxu0 %v407
        %546 = vmatprep.subr.mxu0 0.0
        %547 = vmatpush1.msra.mxu0 %v406
        %548 = vmatprep.subr.mxu0 0.0
        %549 = vmatpush1.msra.mxu0 %v405
        %550 = vmatprep.subr.mxu0 0.0
        %551 = vmatpush1.msra.mxu0 %v404
        %552 = vmatprep.subr.mxu0 0.0
        %553 = vmatpush1.msra.mxu0 %v403
        %554 = vmatprep.subr.mxu0 0.0
        %555 = vmatpush2.msra.mxu0 %v434
        %556 = vmatprep.subr.mxu0 0.0
        %557 = vmatpush2.msra.mxu0 %v433
        %558 = vmatprep.subr.mxu0 0.0
        %559 = vmatpush2.msra.mxu0 %v432
        %560 = vmatprep.subr.mxu0 0.0
        %561 = vmatpush2.msra.mxu0 %v431
        %562 = vmatprep.subr.mxu0 0.0
        %563 = vmatpush2.msra.mxu0 %v430
        %564 = vmatprep.subr.mxu0 0.0
        %565 = vmatpush2.msra.mxu0 %v429
        %566 = vmatprep.subr.mxu0 0.0
        %567 = vmatpush2.msra.mxu0 %v428
        %568 = vmatprep.subr.mxu0 0.0
        %569 = vmatpush2.msra.mxu0 %v427
        %570 = vmatprep.subr.mxu0 0.0
        %571 = vmatpush2.msra.mxu0 %v426
        %572 = vmatprep.subr.mxu0 0.0
        %573 = vmatpush2.msra.mxu0 %v425
        %574 = vmatprep.subr.mxu0 0.0
        %575 = vmatpush2.msra.mxu0 %v424
        %576 = vmatprep.subr.mxu0 0.0
        %577 = vmatpush2.msra.mxu0 %v423
        %578 = vmatprep.subr.mxu0 0.0
        %579 = vmatpush2.msra.mxu0 %v422
        %580 = vmatprep.subr.mxu0 0.0
        %581 = vmatpush2.msra.mxu0 %v421
        %582 = vmatprep.subr.mxu0 0.0
        %583 = vmatpush2.msra.mxu0 %v420
        %584 = vmatprep.subr.mxu0 0.0
        %585 = vmatpush2.msra.mxu0 %v419
        %586 = vmatprep.mubr.f32.mxu0 %v365
        %587 = vmatmul.mubr.f32.gmra.mxu0 %v356
        %v588 = vpop.f32.mrf.mxu0
        %v589 = vadd.f32 %v509, %v588
        %v590 = vpop.f32.mrf.mxu0
        %591 = vmatprep.mubr.f32.mxu0 %v367
        %592 = vmatmul.mubr.f32.gmra.mxu0 %v358
        %v593 = vpop.f32.mrf.mxu0
        %v594 = vadd.f32 %v514, %v593
        %v595 = vpop.f32.mrf.mxu0
        %596 = vmatprep.mubr.f32.mxu0 %v366
        %597 = vmatmul.mubr.f32.gmra.mxu0 %v357
        %v598 = vpop.f32.mrf.mxu0
        %v599 = vadd.f32 %v519, %v598
        %v600 = vpop.f32.mrf.mxu0
        %601 = vdwg.mxu0
        %vm602 = vcmp.ge.f32.partialorder %v589, 0.0
        %vm603 = vcmp.ge.f32.partialorder %v594, 0.0
        %vm604 = vcmp.ge.f32.partialorder %v599, 0.0
        %v605 = vmul.f32 %v589, 0.01
        %v606 = vmul.f32 %v594, 0.01
        %v607 = vmul.f32 %v599, 0.01
        %v608 = vsel %vm602, %v589, %v605
        %v609 = vsel %vm603, %v594, %v606
        %v610 = vsel %vm604, %v599, %v607
        %v611 = vlaneseq
        %v612 = vshrl.u32 %v611, 7
        %v613 = vadd.s32 %v612, 8
        %v614 = vadd.s32 %v612, 16
        %s615 = smul.u32 %s327, 16
        %s616 = ssub.s32 %s615, 2
        %v617 = vstv %s616
        %v618 = vadd.s32 %v617, %v612
        %v619 = vadd.s32 %v617, %v613
        %v620 = vadd.s32 %v617, %v614
        %vm621 = vcmp.ge.s32.totalorder %v618, 0
        %vm622 = vcmp.ge.s32.totalorder %v619, 0
        %vm623 = vcmp.ge.s32.totalorder %v620, 0
        %v624 = vsel %vm621, 1, 0
        %v625 = vsel %vm622, 1, 0
        %v626 = vsel %vm623, 1, 0
        %vm627 = vcmp.eq.s32.totalorder %v624, 1
        %vm628 = vcmp.eq.s32.totalorder %v625, 1
        %vm629 = vcmp.eq.s32.totalorder %v626, 1
        %v630 = vsel %vm627, %v608, 0.0
        %v631 = vsel %vm628, %v609, 0.0
        %v632 = vsel %vm629, %v610, 0.0
        %v636 = vrot.slane %v630, 1
        %v637 = vrot.slane %v631, 1
        %v638 = vsel %vm344, %v636, %v637
        %v639 = vrot.slane %v632, 1
        %v640 = vsel %vm344, %v637, %v639
        %v643 = vrot.slane %v630, 2
        %v644 = vrot.slane %v631, 2
        %v645 = vsel %vm353, %v643, %v644
        %v646 = vrot.slane %v632, 2
        %v647 = vsel %vm353, %v644, %v646
        %v650 = vld [vmem:[#allocation7] sm:$0xff]
        %v651 = vld [vmem:[#allocation7 + $0x8] sm:$0xff]
        %v652 = vld [vmem:[#allocation7 + $0x10] sm:$0xff]
        %v653 = vld [vmem:[#allocation7 + $0x18] sm:$0xff]
        %v654 = vld [vmem:[#allocation7 + $0x20] sm:$0xff]
        %v655 = vld [vmem:[#allocation7 + $0x28] sm:$0xff]
        %v656 = vld [vmem:[#allocation7 + $0x30] sm:$0xff]
        %v657 = vld [vmem:[#allocation7 + $0x38] sm:$0xff]
        %v658 = vld [vmem:[#allocation7 + $0x40] sm:$0xff]
        %v659 = vld [vmem:[#allocation7 + $0x48] sm:$0xff]
        %v660 = vld [vmem:[#allocation7 + $0x50] sm:$0xff]
        %v661 = vld [vmem:[#allocation7 + $0x58] sm:$0xff]
        %v662 = vld [vmem:[#allocation7 + $0x60] sm:$0xff]
        %v663 = vld [vmem:[#allocation7 + $0x68] sm:$0xff]
        %v664 = vld [vmem:[#allocation7 + $0x70] sm:$0xff]
        %v665 = vld [vmem:[#allocation7 + $0x78] sm:$0xff]
        %v666 = vld [vmem:[#allocation7 + $0x80] sm:$0xff]
        %v667 = vld [vmem:[#allocation7 + $0x88] sm:$0xff]
        %v668 = vld [vmem:[#allocation7 + $0x90] sm:$0xff]
        %v669 = vld [vmem:[#allocation7 + $0x98] sm:$0xff]
        %v670 = vld [vmem:[#allocation7 + $0xa0] sm:$0xff]
        %v671 = vld [vmem:[#allocation7 + $0xa8] sm:$0xff]
        %v672 = vld [vmem:[#allocation7 + $0xb0] sm:$0xff]
        %v673 = vld [vmem:[#allocation7 + $0xb8] sm:$0xff]
        %v674 = vld [vmem:[#allocation7 + $0xc0] sm:$0xff]
        %v675 = vld [vmem:[#allocation7 + $0xc8] sm:$0xff]
        %v676 = vld [vmem:[#allocation7 + $0xd0] sm:$0xff]
        %v677 = vld [vmem:[#allocation7 + $0xd8] sm:$0xff]
        %v678 = vld [vmem:[#allocation7 + $0xe0] sm:$0xff]
        %v679 = vld [vmem:[#allocation7 + $0xe8] sm:$0xff]
        %v680 = vld [vmem:[#allocation7 + $0xf0] sm:$0xff]
        %v681 = vld [vmem:[#allocation7 + $0xf8] sm:$0xff]
        %v682 = vld [vmem:[#allocation7 + $0x100] sm:$0xff]
        %v683 = vld [vmem:[#allocation7 + $0x108] sm:$0xff]
        %v684 = vld [vmem:[#allocation7 + $0x110] sm:$0xff]
        %v685 = vld [vmem:[#allocation7 + $0x118] sm:$0xff]
        %v686 = vld [vmem:[#allocation7 + $0x120] sm:$0xff]
        %v687 = vld [vmem:[#allocation7 + $0x128] sm:$0xff]
        %v688 = vld [vmem:[#allocation7 + $0x130] sm:$0xff]
        %v689 = vld [vmem:[#allocation7 + $0x138] sm:$0xff]
        %v690 = vld [vmem:[#allocation7 + $0x140] sm:$0xff]
        %v691 = vld [vmem:[#allocation7 + $0x148] sm:$0xff]
        %v692 = vld [vmem:[#allocation7 + $0x150] sm:$0xff]
        %v693 = vld [vmem:[#allocation7 + $0x158] sm:$0xff]
        %v694 = vld [vmem:[#allocation7 + $0x160] sm:$0xff]
        %v695 = vld [vmem:[#allocation7 + $0x168] sm:$0xff]
        %v696 = vld [vmem:[#allocation7 + $0x170] sm:$0xff]
        %v697 = vld [vmem:[#allocation7 + $0x178] sm:$0xff]
        %v698 = vld [vmem:[%s5] sm:$0x1]
        %v700 = vlaneseq
        %v701 = vshrl.u32 %v700, 7
        %v702 = vsub.s32 0, %v701
        %v703 = vrot.slane %v698, %v702
        %705 = vmatprep.subr.mxu0 0.0
        %706 = vmatpush1.msra.mxu0 %v665
        %707 = vmatprep.subr.mxu0 0.0
        %708 = vmatpush1.msra.mxu0 %v664
        %709 = vmatprep.subr.mxu0 0.0
        %710 = vmatpush1.msra.mxu0 %v663
        %711 = vmatprep.subr.mxu0 0.0
        %712 = vmatpush1.msra.mxu0 %v662
        %713 = vmatprep.subr.mxu0 0.0
        %714 = vmatpush1.msra.mxu0 %v661
        %715 = vmatprep.subr.mxu0 0.0
        %716 = vmatpush1.msra.mxu0 %v660
        %717 = vmatprep.subr.mxu0 0.0
        %718 = vmatpush1.msra.mxu0 %v659
        %719 = vmatprep.subr.mxu0 0.0
        %720 = vmatpush1.msra.mxu0 %v658
        %721 = vmatprep.subr.mxu0 0.0
        %722 = vmatpush1.msra.mxu0 %v657
        %723 = vmatprep.subr.mxu0 0.0
        %724 = vmatpush1.msra.mxu0 %v656
        %725 = vmatprep.subr.mxu0 0.0
        %726 = vmatpush1.msra.mxu0 %v655
        %727 = vmatprep.subr.mxu0 0.0
        %728 = vmatpush1.msra.mxu0 %v654
        %729 = vmatprep.subr.mxu0 0.0
        %730 = vmatpush1.msra.mxu0 %v653
        %731 = vmatprep.subr.mxu0 0.0
        %732 = vmatpush1.msra.mxu0 %v652
        %733 = vmatprep.subr.mxu0 0.0
        %734 = vmatpush1.msra.mxu0 %v651
        %735 = vmatprep.subr.mxu0 0.0
        %736 = vmatpush1.msra.mxu0 %v650
        %737 = vmatprep.subr.mxu0 0.0
        %738 = vmatpush2.msra.mxu0 %v681
        %739 = vmatprep.subr.mxu0 0.0
        %740 = vmatpush2.msra.mxu0 %v680
        %741 = vmatprep.subr.mxu0 0.0
        %742 = vmatpush2.msra.mxu0 %v679
        %743 = vmatprep.subr.mxu0 0.0
        %744 = vmatpush2.msra.mxu0 %v678
        %745 = vmatprep.subr.mxu0 0.0
        %746 = vmatpush2.msra.mxu0 %v677
        %747 = vmatprep.subr.mxu0 0.0
        %748 = vmatpush2.msra.mxu0 %v676
        %749 = vmatprep.subr.mxu0 0.0
        %750 = vmatpush2.msra.mxu0 %v675
        %751 = vmatprep.subr.mxu0 0.0
        %752 = vmatpush2.msra.mxu0 %v674
        %753 = vmatprep.subr.mxu0 0.0
        %754 = vmatpush2.msra.mxu0 %v673
        %755 = vmatprep.subr.mxu0 0.0
        %756 = vmatpush2.msra.mxu0 %v672
        %757 = vmatprep.subr.mxu0 0.0
        %758 = vmatpush2.msra.mxu0 %v671
        %759 = vmatprep.subr.mxu0 0.0
        %760 = vmatpush2.msra.mxu0 %v670
        %761 = vmatprep.subr.mxu0 0.0
        %762 = vmatpush2.msra.mxu0 %v669
        %763 = vmatprep.subr.mxu0 0.0
        %764 = vmatpush2.msra.mxu0 %v668
        %765 = vmatprep.subr.mxu0 0.0
        %766 = vmatpush2.msra.mxu0 %v667
        %767 = vmatprep.subr.mxu0 0.0
        %768 = vmatpush2.msra.mxu0 %v666
        %769 = vmatprep.mubr.f32.mxu0 %v638
        %770 = vmatmul.mubr.f32.gmra.mxu0 %v630
        %v771 = vpop.f32.mrf.mxu0
        %v772 = vadd.f32 %v703, %v771
        %v773 = vpop.f32.mrf.mxu0
        %774 = vmatprep.mubr.f32.mxu0 %v640
        %775 = vmatmul.mubr.f32.gmra.mxu0 %v631
        %v776 = vpop.f32.mrf.mxu0
        %v777 = vadd.f32 %v703, %v776
        %v778 = vpop.f32.mrf.mxu0
        %779 = vdwg.mxu0
        %780 = vmatprep.subr.mxu0 0.0
        %781 = vmatpush1.msra.mxu0 %v697
        %782 = vmatprep.subr.mxu0 0.0
        %783 = vmatpush1.msra.mxu0 %v696
        %784 = vmatprep.subr.mxu0 0.0
        %785 = vmatpush1.msra.mxu0 %v695
        %786 = vmatprep.subr.mxu0 0.0
        %787 = vmatpush1.msra.mxu0 %v694
        %788 = vmatprep.subr.mxu0 0.0
        %789 = vmatpush1.msra.mxu0 %v693
        %790 = vmatprep.subr.mxu0 0.0
        %791 = vmatpush1.msra.mxu0 %v692
        %792 = vmatprep.subr.mxu0 0.0
        %793 = vmatpush1.msra.mxu0 %v691
        %794 = vmatprep.subr.mxu0 0.0
        %795 = vmatpush1.msra.mxu0 %v690
        %796 = vmatprep.subr.mxu0 0.0
        %797 = vmatpush1.msra.mxu0 %v689
        %798 = vmatprep.subr.mxu0 0.0
        %799 = vmatpush1.msra.mxu0 %v688
        %800 = vmatprep.subr.mxu0 0.0
        %801 = vmatpush1.msra.mxu0 %v687
        %802 = vmatprep.subr.mxu0 0.0
        %803 = vmatpush1.msra.mxu0 %v686
        %804 = vmatprep.subr.mxu0 0.0
        %805 = vmatpush1.msra.mxu0 %v685
        %806 = vmatprep.subr.mxu0 0.0
        %807 = vmatpush1.msra.mxu0 %v684
        %808 = vmatprep.subr.mxu0 0.0
        %809 = vmatpush1.msra.mxu0 %v683
        %810 = vmatprep.subr.mxu0 0.0
        %811 = vmatpush1.msra.mxu0 %v682
        %812 = vmatprep.subr.mxu0 0.0
        %813 = vmatpush2.msra.mxu0 0.0
        %814 = vmatprep.subr.mxu0 0.0
        %815 = vmatpush2.msra.mxu0 0.0
        %816 = vmatprep.subr.mxu0 0.0
        %817 = vmatpush2.msra.mxu0 0.0
        %818 = vmatprep.subr.mxu0 0.0
        %819 = vmatpush2.msra.mxu0 0.0
        %820 = vmatprep.subr.mxu0 0.0
        %821 = vmatpush2.msra.mxu0 0.0
        %822 = vmatprep.subr.mxu0 0.0
        %823 = vmatpush2.msra.mxu0 0.0
        %824 = vmatprep.subr.mxu0 0.0
        %825 = vmatpush2.msra.mxu0 0.0
        %826 = vmatprep.subr.mxu0 0.0
        %827 = vmatpush2.msra.mxu0 0.0
        %828 = vmatprep.subr.mxu0 0.0
        %829 = vmatpush2.msra.mxu0 0.0
        %830 = vmatprep.subr.mxu0 0.0
        %831 = vmatpush2.msra.mxu0 0.0
        %832 = vmatprep.subr.mxu0 0.0
        %833 = vmatpush2.msra.mxu0 0.0
        %834 = vmatprep.subr.mxu0 0.0
        %835 = vmatpush2.msra.mxu0 0.0
        %836 = vmatprep.subr.mxu0 0.0
        %837 = vmatpush2.msra.mxu0 0.0
        %838 = vmatprep.subr.mxu0 0.0
        %839 = vmatpush2.msra.mxu0 0.0
        %840 = vmatprep.subr.mxu0 0.0
        %841 = vmatpush2.msra.mxu0 0.0
        %842 = vmatprep.subr.mxu0 0.0
        %843 = vmatpush2.msra.mxu0 0.0
        %844 = vmatprep.mubr.f32.mxu0 0.0
        %845 = vmatmul.mubr.f32.gmra.mxu0 %v645
        %v846 = vpop.f32.mrf.mxu0
        %v847 = vadd.f32 %v772, %v846
        %v848 = vpop.f32.mrf.mxu0
        %849 = vmatprep.mubr.f32.mxu0 0.0
        %850 = vmatmul.mubr.f32.gmra.mxu0 %v647
        %v851 = vpop.f32.mrf.mxu0
        %v852 = vadd.f32 %v777, %v851
        %v853 = vpop.f32.mrf.mxu0
        %854 = vdwg.mxu0
        %v855 = vadd.f32 %v847, %v328
        %v856 = vadd.f32 %v852, %v329
        %857 = vst [vmem:[%s311] sm:$0xff] %v855
        %858 = vst [vmem:[%s311 + $0x8] sm:$0xff] %v856
        %s859 = sand.u32 %s168, 1
        %s860 = scalar_lea.sflag [#allocation4], %s859
        %s861 = sand.u32 %s168, 1
        %s862 = smul.addr %s861, 16
        %s863 = scalar_lea.vmem [#allocation8], %s862
        // Predicated region
        $region57: #{tpu_custom_call.1} parent=43 // pred_check
          %p864 = pneg %p178
        $region58: #{tpu_custom_call.1} parent=43 // pred_check_branch
          %866 = sbr.rel (%p864) target = $region60
        $region59: #{tpu_custom_call.1} parent=43 // pred_region
          %s868 = ssub.s32 256, 256
          %869 = vsyncadd %s860, %s868
          %s870 = smul.addr %s24, 2
          %s871 = smul.addr %s870, 128
          %s872 = scalar_lea.hbm %s6, %s871
          %s873 = sshll.u32 %s863, 4
          %s874 = int_to_ptr.vmem [resolvable:$true] %s873
          %879 = dma.vmem_to_hbm [thread:$0]  %s874, 256, %s872, %s860, 128, 128, 8
        $region60: #{tpu_custom_call.1} parent=43 // pred_fallthru
          _
      $region44: #{tpu_custom_call.1} parent=5 // pred_fallthru
        _
      %p880 = scmp.le.s32.totalorder 2, %s19
      // Predicated region
      $region61: #{tpu_custom_call.1} parent=5 // pred_check
        %p881 = pneg %p880
      $region62: #{tpu_custom_call.1} parent=5 // pred_check_branch
        %883 = sbr.rel (%p881) target = $region64
      $region63: #{tpu_custom_call.1} parent=5 // pred_region
        %s884 = ssub.s32 %s19, 2
        // Predicated region
        $region65: #{tpu_custom_call.1} parent=63 // pred_check
          %p885 = pneg %p184
        $region66: #{tpu_custom_call.1} parent=63 // pred_check_branch
          %887 = sbr.rel (%p885) target = $region68
        $region67: #{tpu_custom_call.1} parent=63 // pred_region
          %s888 = sand.u32 %s169, 1
          %s889 = scalar_lea.sflag [#allocation4], %s888
          %s890 = sand.u32 %s169, 1
          %s891 = smul.addr %s890, 16
          %s892 = scalar_lea.vmem [#allocation8], %s891
          %893 = dma.done %s889, 256
        $region68: #{tpu_custom_call.1} parent=63 // pred_fallthru
          _
      $region64: #{tpu_custom_call.1} parent=5 // pred_fallthru
        _
    $region6: #{tpu_custom_call.1} parent=1 // loop_footer
      %s23 = sadd.s32 1, %s19
    $region7: #{tpu_custom_call.1} parent=1 // loop_footer_branch
      %18 = sbr.rel target = $region3
    $region8: #{tpu_custom_call.1} parent=1 // loop_exit
      _
    %894 = vsyncpa [#allocation3], 1
    %s895 = scalar_lea.sflag [#allocation3], 1
    %896 = vsyncpa %s895, 1
    %897 = vsyncpa [#allocation6], 1
    %898 = vsyncpa [#allocation4], 1
    %s899 = scalar_lea.sflag [#allocation4], 1
    %900 = vsyncpa %s899, 1

</llo_original>
